<compile_context>
chip_gen: v6e
topology: v6e:2x2x1
jax: 0.10.0
libtpu: 0.0.40
codegen_flags: <defaults>
</compile_context>

<pallas_src>
import functools

import jax
import jax.numpy as jnp
from jax import lax
from jax.experimental import pallas as pl
from jax.experimental.pallas import tpu as pltpu


# Contract dim 1 of both operands: A @ B.T without materializing a transpose.
_NT_DIM_NUMBERS = (((1,), (1,)), ((), ()))


def _round_up(x, m):
    return ((x + m - 1) // m) * m


def _device_kind():
    try:
        return jax.devices()[0].device_kind.lower()
    except Exception:
        return ""


def _ntxent_kernel(out1_ref, out2_ref, partial_ref, *, temperature, block_rows,
                   batch_size, padded_batch, exp_dtype):
    """Partial NT-Xent loss for one block of `block_rows` paired rows.

    out1_ref / out2_ref : [padded_batch, D] embeddings in matmul dtype,
                          resident in VMEM across the whole grid.
    partial_ref         : [1, 1, 1] sum over the valid rows in this block of
        (log denom_i - pos_i/T) + (log denom_{B+i} - pos_i/T).
    """
    inv_t = 1.0 / float(temperature)
    exp_is_f32 = jnp.dtype(exp_dtype) == jnp.dtype(jnp.float32)
    mm_dtype = out1_ref.dtype

    i = pl.program_id(0)
    r0 = pl.multiple_of(i * block_rows, block_rows)

    # Row blocks for both halves; small f32 copies for VPU/EUP math.
    o1 = out1_ref[pl.ds(r0, block_rows), :]
    o2 = out2_ref[pl.ds(r0, block_rows), :]
    o1_f32 = o1.astype(jnp.float32)
    o2_f32 = o2.astype(jnp.float32)

    # Fold 1/T into the (small) row operand instead of scaling the big slabs.
    rows_scaled_f32 = jnp.concatenate([o1_f32 * inv_t, o2_f32 * inv_t], axis=0)
    rows_mm = rows_scaled_f32.astype(mm_dtype)           # [2*block_rows, D]

    # Two matmuls (one per resident column operand), f32 MXU accumulation.
    z1 = lax.dot_general(rows_mm, out1_ref[...], _NT_DIM_NUMBERS,
                         preferred_element_type=jnp.float32)
    z2 = lax.dot_general(rows_mm, out2_ref[...], _NT_DIM_NUMBERS,
                         preferred_element_type=jnp.float32)

    # Row max over both halves for the log-sum-exp shift.
    m = jnp.maximum(jnp.max(z1, axis=-1, keepdims=True),
                    jnp.max(z2, axis=-1, keepdims=True))  # [2*block_rows, 1]

    # "Sum all columns, subtract the diagonal" (no n x n iota mask).
    # Diagonal is recomputed from the SAME rounded operands as the MXU so the
    # cancellation is (numerically) exact on the bf16 path too.
    rows_mm_f32 = rows_mm.astype(jnp.float32)
    cols_block_f32 = jnp.concatenate([o1_f32, o2_f32], axis=0)
    diag = jnp.sum(rows_mm_f32 * cols_block_f32, axis=-1, keepdims=True)

    def _exp(x):
        if exp_is_f32:
            return jnp.exp(x)
        return jnp.exp(x.astype(exp_dtype)).astype(jnp.float32)

    rs = (jnp.sum(_exp(z1 - m), axis=-1, keepdims=True)
          + jnp.sum(_exp(z2 - m), axis=-1, keepdims=True)
          - _exp(diag - m))

    # Zero-padded columns (if any) each contributed exp(0 - m) to both halves.
    n_pad_cols = padded_batch - batch_size
    if n_pad_cols:
        rs = rs - (2.0 * n_pad_cols) * _exp(-m)

    # Positive-pair similarity, kept in log space; same value for row i and
    # row B+i (matches torch's cat([pos_sim, pos_sim])).
    pos = jnp.sum(o1_f32 * o2_f32, axis=-1, keepdims=True) * inv_t
    pos2 = jnp.concatenate([pos, pos], axis=0)            # [2*block_rows, 1]

    terms = m + jnp.log(rs) - pos2                        # log denom - pos/T

    if padded_batch != batch_size:
        row_ids = r0 + lax.broadcasted_iota(jnp.int32, (block_rows, 1), 0)
        valid = (row_ids < batch_size).astype(jnp.float32)
        terms = terms * jnp.concatenate([valid, valid], axis=0)

    partial_ref[...] = jnp.sum(terms).reshape(1, 1, 1)


def loss_fn_pallas(out_1, out_2, temperature, batch_size, *, block_rows=None,
                   matmul_dtype=jnp.bfloat16, exp_dtype=None):
    """Pallas implementation of Loss_fn.forward(out_1, out_2)."""
    batch_size = int(batch_size)
    b, d = out_1.shape
    assert b == batch_size and out_2.shape == (b, d)

    kind = _device_kind()
    is_v7x = "v7" in kind
    has_bf16_eup = ("v6" in kind) or is_v7x   # v5e and older: no bf16 EUP/VPU.

    if exp_dtype is None:
        exp_dtype = (jnp.bfloat16
                     if has_bf16_eup and jnp.dtype(matmul_dtype) != jnp.float32
                     else jnp.float32)

    # Row-block size: multiple of 8 (sublane), chip-aware cap; on v7x make
    # sure there are >=2 grid steps when possible so both TensorCores work.
    if is_v7x:
        cap = 128
    else:
        cap = 512 if batch_size >= 2048 else 256
    if block_rows is not None:
        cap = min(cap, max(8, int(block_rows)))
    br = min(cap, _round_up(batch_size, 8))
    if is_v7x and batch_size >= 16:
        br = min(br, _round_up((batch_size + 1) // 2, 8))
    br = max(8, (br // 8) * 8)
    padded_batch = _round_up(batch_size, br)
    num_blocks = padded_batch // br

    # Cast once in the wrapper (not per grid step); pad rows to the block grid.
    o1 = out_1.astype(matmul_dtype)
    o2 = out_2.astype(matmul_dtype)
    if padded_batch != batch_size:
        pad = padded_batch - batch_size
        o1 = jnp.pad(o1, ((0, pad), (0, 0)))
        o2 = jnp.pad(o2, ((0, pad), (0, 0)))

    kernel = functools.partial(
        _ntxent_kernel,
        temperature=float(temperature),
        block_rows=br,
        batch_size=batch_size,
        padded_batch=padded_batch,
        exp_dtype=exp_dtype,
    )

    # VMEM budget estimate -> explicit, chip-aware limit.
    mm_bytes = jnp.dtype(matmul_dtype).itemsize
    exp_bytes = jnp.dtype(exp_dtype).itemsize
    est = (2 * padded_batch * d * mm_bytes            # resident out_1/out_2
           + 2 * br * d * (4 + mm_bytes)              # f32 + mm row blocks
           + 2 * 2 * br * padded_batch * 4            # two [2*br, 2B-half] f32 slabs
           + 2 * 2 * br * padded_batch * exp_bytes)   # exp temporaries
    vmem_cap = (40 << 20) if is_v7x else (96 << 20)
    vmem_limit = int(min(max(2 * est, 16 << 20), vmem_cap))

    def _run(in_specs):
        return pl.pallas_call(
            kernel,
            out_shape=jax.ShapeDtypeStruct((num_blocks, 1, 1), jnp.float32),
            grid=(num_blocks,),
            in_specs=in_specs,
            out_specs=pl.BlockSpec((1, 1, 1), lambda i: (i, 0, 0)),
            compiler_params=pltpu.CompilerParams(
                dimension_semantics=("parallel",),   # shards across TCs on v7x
                vmem_limit_bytes=vmem_limit,
            ),
        )(o1, o2)

    try:
        # Resident (grid-invariant) inputs: single-buffer them; their
        # index_map is constant so double-buffering only wastes VMEM.
        spec = pl.BlockSpec((padded_batch, d), lambda i: (0, 0),
                            pipeline_mode=pl.Buffered(1))
        partials = _run([spec, spec])
    except Exception:
        # Fallback for jax versions without pipeline_mode / Buffered(1).
        spec = pl.BlockSpec((padded_batch, d), lambda i: (0, 0))
        partials = _run([spec, spec])

    # Mean over the true 2B rows (padding rows are masked out in-kernel).
    return jnp.sum(partials) / (2.0 * batch_size)


def loss_fn_ref(out_1, out_2, temperature, batch_size):
    """Pure-JAX reference mirroring the PyTorch forward (f32 math)."""
    out = jnp.concatenate([out_1, out_2], axis=0).astype(jnp.float32)
    n = 2 * batch_size
    sim = jnp.exp(
        jnp.einsum("id,jd->ij", out, out, precision=jax.lax.Precision.HIGHEST)
        / temperature)
    off_diag = ~jnp.eye(n, dtype=bool)
    denom = jnp.sum(jnp.where(off_diag, sim, 0.0), axis=-1)
    pos = jnp.exp(jnp.sum(out_1 * out_2, axis=-1) / temperature)
    pos = jnp.concatenate([pos, pos], axis=0)
    return jnp.mean(-jnp.log(pos / denom))


if __name__ == "__main__":
    temperature = 0.5

    # --- main check: batch 8, dim 32 (SimCLR-style normalized projections) ---
    batch_size = 8
    feature_dim = 32
    key = jax.random.PRNGKey(0)
    k1, k2, k3, k4 = jax.random.split(key, 4)
    out_1 = jax.random.normal(k1, (batch_size, feature_dim), dtype=jnp.float32)
    out_2 = jax.random.normal(k2, (batch_size, feature_dim), dtype=jnp.float32)
    out_1 = out_1 / jnp.linalg.norm(out_1, axis=-1, keepdims=True)
    out_2 = out_2 / jnp.linalg.norm(out_2, axis=-1, keepdims=True)

    ref = loss_fn_ref(out_1, out_2, temperature, batch_size)

    # f32 MXU path: tight check against the PyTorch-mirroring reference.
    loss_f32 = loss_fn_pallas(out_1, out_2, temperature, batch_size,
                              matmul_dtype=jnp.float32)
    jax.block_until_ready(loss_f32)
    assert jnp.allclose(loss_f32, ref, rtol=5e-3, atol=5e-3), (loss_f32, ref)

    # bf16 MXU fast path (f32 accumulate; bf16 exp on v6e/v7x only).
    loss_bf16 = loss_fn_pallas(out_1, out_2, temperature, batch_size,
                               matmul_dtype=jnp.bfloat16)
    jax.block_until_ready(loss_bf16)
    assert jnp.allclose(loss_bf16, ref, rtol=2e-2, atol=2e-2), (loss_bf16, ref)

    # --- non-multiple-of-8 batch: exercises the pad/mask + column-correction path ---
    bs2 = 12
    a = jax.random.normal(k3, (bs2, feature_dim), dtype=jnp.float32)
    b = jax.random.normal(k4, (bs2, feature_dim), dtype=jnp.float32)
    a = a / jnp.linalg.norm(a, axis=-1, keepdims=True)
    b = b / jnp.linalg.norm(b, axis=-1, keepdims=True)
    ref2 = loss_fn_ref(a, b, temperature, bs2)
    loss2 = loss_fn_pallas(a, b, temperature, bs2, matmul_dtype=jnp.float32)
    jax.block_until_ready(loss2)
    assert jnp.allclose(loss2, ref2, rtol=5e-3, atol=5e-3), (loss2, ref2)

    print("KERNEL_OK")
</pallas_src>

<mosaic_0001>
module attributes {stable_mosaic.version = 11 : i64} {
  func.func @_ntxent_kernel(%arg0: i32, %arg1: memref<8x32xf32, #tpu.memory_space<vmem>>, %arg2: memref<8x32xf32, #tpu.memory_space<vmem>>, %arg3: memref<1x1x1xf32, #tpu.memory_space<vmem>>) attributes {dimension_semantics = [#tpu.dimension_semantics<parallel>], iteration_bounds = array<i64: 1>, scalar_prefetch = 0 : i64, scratch_operands = 0 : i64, tpu.core_type = #tpu.core_type<tc>, window_params = [{pipeline_mode = #tpu.pipeline_mode<synchronous>, transform_indices = @transform_0, window_bounds = array<i64: 8, 32>}, {pipeline_mode = #tpu.pipeline_mode<synchronous>, transform_indices = @transform_1, window_bounds = array<i64: 8, 32>}, {transform_indices = @transform_2, window_bounds = array<i64: 1, 1, 1>}]} {
    %c8_i32 = arith.constant 8 : i32
    %0 = arith.muli %arg0, %c8_i32 : i32
    %1 = tpu.assume_multiple %0, 8 : i32
    %2 = arith.index_cast %1 : i32 to index
    %c0 = arith.constant 0 : index
    %3 = vector.load %arg1[%2, %c0] : memref<8x32xf32, #tpu.memory_space<vmem>>, vector<8x32xf32>
    %4 = arith.index_cast %1 : i32 to index
    %c0_0 = arith.constant 0 : index
    %5 = vector.load %arg2[%4, %c0_0] : memref<8x32xf32, #tpu.memory_space<vmem>>, vector<8x32xf32>
    %cst = arith.constant 2.000000e+00 : f32
    %6 = vector.broadcast %cst : f32 to vector<8x32xf32>
    %7 = arith.mulf %3, %6 : vector<8x32xf32>
    %cst_1 = arith.constant 2.000000e+00 : f32
    %8 = vector.broadcast %cst_1 : f32 to vector<8x32xf32>
    %9 = arith.mulf %5, %8 : vector<8x32xf32>
    %10 = tpu.concatenate %7, %9 in 0 : vector<8x32xf32>, vector<8x32xf32> -> vector<16x32xf32>
    %c0_2 = arith.constant 0 : index
    %c0_3 = arith.constant 0 : index
    %11 = vector.load %arg1[%c0_2, %c0_3] : memref<8x32xf32, #tpu.memory_space<vmem>>, vector<8x32xf32>
    %cst_4 = arith.constant dense<0.000000e+00> : vector<16x8xf32>
    %12 = tpu.matmul %10, %11, %cst_4 {dimension_numbers = #tpu.dot_dimension_numbers<[1], [1], [0], [0], [0, 0, 1, 0], [], []>} : vector<16x32xf32>, vector<8x32xf32>, vector<16x8xf32> -> vector<16x8xf32>
    %c0_5 = arith.constant 0 : index
    %c0_6 = arith.constant 0 : index
    %13 = vector.load %arg2[%c0_5, %c0_6] : memref<8x32xf32, #tpu.memory_space<vmem>>, vector<8x32xf32>
    %cst_7 = arith.constant dense<0.000000e+00> : vector<16x8xf32>
    %14 = tpu.matmul %10, %13, %cst_7 {dimension_numbers = #tpu.dot_dimension_numbers<[1], [1], [0], [0], [0, 0, 1, 0], [], []>} : vector<16x32xf32>, vector<8x32xf32>, vector<16x8xf32> -> vector<16x8xf32>
    %cst_8 = arith.constant dense<0xFF800000> : vector<16xf32>
    %15 = vector.multi_reduction <maximumf>, %12, %cst_8 [1] : vector<16x8xf32> to vector<16xf32>
    %16 = vector.shape_cast %15 : vector<16xf32> to vector<16x1xf32>
    %cst_9 = arith.constant dense<0xFF800000> : vector<16xf32>
    %17 = vector.multi_reduction <maximumf>, %14, %cst_9 [1] : vector<16x8xf32> to vector<16xf32>
    %18 = vector.shape_cast %17 : vector<16xf32> to vector<16x1xf32>
    %19 = arith.maximumf %16, %18 : vector<16x1xf32>
    %20 = tpu.concatenate %3, %5 in 0 : vector<8x32xf32>, vector<8x32xf32> -> vector<16x32xf32>
    %21 = arith.mulf %10, %20 : vector<16x32xf32>
    %cst_10 = arith.constant dense<0.000000e+00> : vector<16xf32>
    %22 = vector.multi_reduction <add>, %21, %cst_10 [1] : vector<16x32xf32> to vector<16xf32>
    %23 = vector.shape_cast %22 : vector<16xf32> to vector<16x1xf32>
    %24 = vector.broadcast %19 : vector<16x1xf32> to vector<16x8xf32>
    %25 = arith.subf %12, %24 : vector<16x8xf32>
    %26 = math.exp %25 : vector<16x8xf32>
    %cst_11 = arith.constant dense<0.000000e+00> : vector<16xf32>
    %27 = vector.multi_reduction <add>, %26, %cst_11 [1] : vector<16x8xf32> to vector<16xf32>
    %28 = vector.shape_cast %27 : vector<16xf32> to vector<16x1xf32>
    %29 = vector.broadcast %19 : vector<16x1xf32> to vector<16x8xf32>
    %30 = arith.subf %14, %29 : vector<16x8xf32>
    %31 = math.exp %30 : vector<16x8xf32>
    %cst_12 = arith.constant dense<0.000000e+00> : vector<16xf32>
    %32 = vector.multi_reduction <add>, %31, %cst_12 [1] : vector<16x8xf32> to vector<16xf32>
    %33 = vector.shape_cast %32 : vector<16xf32> to vector<16x1xf32>
    %34 = arith.addf %28, %33 : vector<16x1xf32>
    %35 = arith.subf %23, %19 : vector<16x1xf32>
    %36 = math.exp %35 : vector<16x1xf32>
    %37 = arith.subf %34, %36 : vector<16x1xf32>
    %38 = arith.mulf %3, %5 : vector<8x32xf32>
    %cst_13 = arith.constant dense<0.000000e+00> : vector<8xf32>
    %39 = vector.multi_reduction <add>, %38, %cst_13 [1] : vector<8x32xf32> to vector<8xf32>
    %40 = vector.shape_cast %39 : vector<8xf32> to vector<8x1xf32>
    %cst_14 = arith.constant 2.000000e+00 : f32
    %41 = vector.broadcast %cst_14 : f32 to vector<8x1xf32>
    %42 = arith.mulf %40, %41 : vector<8x1xf32>
    %43 = tpu.concatenate %42, %42 in 0 : vector<8x1xf32>, vector<8x1xf32> -> vector<16x1xf32>
    %44 = math.log %37 : vector<16x1xf32>
    %45 = arith.addf %19, %44 : vector<16x1xf32>
    %46 = arith.subf %45, %43 : vector<16x1xf32>
    %47 = vector.shape_cast %46 : vector<16x1xf32> to vector<1x16x1xf32>
    %cst_15 = arith.constant dense<0.000000e+00> : vector<1xf32>
    %48 = vector.multi_reduction <add>, %47, %cst_15 [1, 2] : vector<1x16x1xf32> to vector<1xf32>
    %49 = vector.shape_cast %48 : vector<1xf32> to vector<1x1x1xf32>
    %50 = vector.extract %49[0, 0, 0] : f32 from vector<1x1x1xf32>
    %51 = vector.broadcast %50 : f32 to vector<1x1x1xf32>
    %c0_16 = arith.constant 0 : index
    %c0_17 = arith.constant 0 : index
    %c0_18 = arith.constant 0 : index
    %52 = vector.load %arg3[%c0_16, %c0_17, %c0_18] : memref<1x1x1xf32, #tpu.memory_space<vmem>>, vector<1x1x1xf32>
    tpu.vector_store %arg3[%c0_16, %c0_17, %c0_18], %51 {strides = array<i32>} : memref<1x1x1xf32, #tpu.memory_space<vmem>>, vector<1x1x1xf32>,
    return
  }
  func.func @transform_0(%arg0: i32) -> (i32, i32) {
    %c0_i32 = arith.constant 0 : i32
    %c0_i32_0 = arith.constant 0 : i32
    %c0_i32_1 = arith.constant 0 : i32
    return %c0_i32, %c0_i32_0 : i32, i32
  }
  func.func @transform_1(%arg0: i32) -> (i32, i32) {
    %c0_i32 = arith.constant 0 : i32
    %c0_i32_0 = arith.constant 0 : i32
    %c0_i32_1 = arith.constant 0 : i32
    return %c0_i32, %c0_i32_0 : i32, i32
  }
  func.func @transform_2(%arg0: i32) -> (i32, i32, i32) {
    %c0_i32 = arith.constant 0 : i32
    %c0_i32_0 = arith.constant 0 : i32
    %c0_i32_1 = arith.constant 0 : i32
    return %arg0, %c0_i32, %c0_i32_0 : i32, i32, i32
  }
}

module attributes {stable_mosaic.version = 11 : i64} {
  func.func @_ntxent_kernel(%arg0: i32, %arg1: memref<8x32xf32, #tpu.memory_space<vmem>>, %arg2: memref<8x32xf32, #tpu.memory_space<vmem>>, %arg3: memref<1x1x1xf32, #tpu.memory_space<vmem>>) attributes {dimension_semantics = [#tpu.dimension_semantics<parallel>], iteration_bounds = array<i64: 1>, scalar_prefetch = 0 : i64, scratch_operands = 0 : i64, tpu.core_type = #tpu.core_type<tc>, window_params = [{pipeline_mode = #tpu.pipeline_mode<synchronous>, transform_indices = @transform_0, window_bounds = array<i64: 8, 32>}, {pipeline_mode = #tpu.pipeline_mode<synchronous>, transform_indices = @transform_1, window_bounds = array<i64: 8, 32>}, {transform_indices = @transform_2, window_bounds = array<i64: 1, 1, 1>}]} {
    %c8_i32 = arith.constant 8 : i32
    %0 = arith.muli %arg0, %c8_i32 : i32
    %1 = tpu.assume_multiple %0, 8 : i32
    %2 = arith.index_cast %1 : i32 to index
    %c0 = arith.constant 0 : index
    %3 = vector.load %arg1[%2, %c0] : memref<8x32xf32, #tpu.memory_space<vmem>>, vector<8x32xf32>
    %4 = arith.index_cast %1 : i32 to index
    %c0_0 = arith.constant 0 : index
    %5 = vector.load %arg2[%4, %c0_0] : memref<8x32xf32, #tpu.memory_space<vmem>>, vector<8x32xf32>
    %cst = arith.constant 2.000000e+00 : f32
    %6 = vector.broadcast %cst : f32 to vector<8x32xf32>
    %7 = arith.mulf %3, %6 : vector<8x32xf32>
    %cst_1 = arith.constant 2.000000e+00 : f32
    %8 = vector.broadcast %cst_1 : f32 to vector<8x32xf32>
    %9 = arith.mulf %5, %8 : vector<8x32xf32>
    %10 = tpu.concatenate %7, %9 in 0 : vector<8x32xf32>, vector<8x32xf32> -> vector<16x32xf32>
    %c0_2 = arith.constant 0 : index
    %c0_3 = arith.constant 0 : index
    %11 = vector.load %arg1[%c0_2, %c0_3] : memref<8x32xf32, #tpu.memory_space<vmem>>, vector<8x32xf32>
    %cst_4 = arith.constant dense<0.000000e+00> : vector<16x8xf32>
    %12 = tpu.matmul %10, %11, %cst_4 {dimension_numbers = #tpu.dot_dimension_numbers<[1], [1], [0], [0], [0, 0, 1, 0], [], []>} : vector<16x32xf32>, vector<8x32xf32>, vector<16x8xf32> -> vector<16x8xf32>
    %c0_5 = arith.constant 0 : index
    %c0_6 = arith.constant 0 : index
    %13 = vector.load %arg2[%c0_5, %c0_6] : memref<8x32xf32, #tpu.memory_space<vmem>>, vector<8x32xf32>
    %cst_7 = arith.constant dense<0.000000e+00> : vector<16x8xf32>
    %14 = tpu.matmul %10, %13, %cst_7 {dimension_numbers = #tpu.dot_dimension_numbers<[1], [1], [0], [0], [0, 0, 1, 0], [], []>} : vector<16x32xf32>, vector<8x32xf32>, vector<16x8xf32> -> vector<16x8xf32>
    %cst_8 = arith.constant dense<0xFF800000> : vector<16xf32>
    %15 = vector.multi_reduction <maximumf>, %12, %cst_8 [1] : vector<16x8xf32> to vector<16xf32>
    %16 = vector.shape_cast %15 : vector<16xf32> to vector<16x1xf32>
    %cst_9 = arith.constant dense<0xFF800000> : vector<16xf32>
    %17 = vector.multi_reduction <maximumf>, %14, %cst_9 [1] : vector<16x8xf32> to vector<16xf32>
    %18 = vector.shape_cast %17 : vector<16xf32> to vector<16x1xf32>
    %19 = arith.maximumf %16, %18 : vector<16x1xf32>
    %20 = tpu.concatenate %3, %5 in 0 : vector<8x32xf32>, vector<8x32xf32> -> vector<16x32xf32>
    %21 = arith.mulf %10, %20 : vector<16x32xf32>
    %cst_10 = arith.constant dense<0.000000e+00> : vector<16xf32>
    %22 = vector.multi_reduction <add>, %21, %cst_10 [1] : vector<16x32xf32> to vector<16xf32>
    %23 = vector.shape_cast %22 : vector<16xf32> to vector<16x1xf32>
    %24 = vector.broadcast %19 : vector<16x1xf32> to vector<16x8xf32>
    %25 = arith.subf %12, %24 : vector<16x8xf32>
    %26 = math.exp %25 : vector<16x8xf32>
    %cst_11 = arith.constant dense<0.000000e+00> : vector<16xf32>
    %27 = vector.multi_reduction <add>, %26, %cst_11 [1] : vector<16x8xf32> to vector<16xf32>
    %28 = vector.shape_cast %27 : vector<16xf32> to vector<16x1xf32>
    %29 = vector.broadcast %19 : vector<16x1xf32> to vector<16x8xf32>
    %30 = arith.subf %14, %29 : vector<16x8xf32>
    %31 = math.exp %30 : vector<16x8xf32>
    %cst_12 = arith.constant dense<0.000000e+00> : vector<16xf32>
    %32 = vector.multi_reduction <add>, %31, %cst_12 [1] : vector<16x8xf32> to vector<16xf32>
    %33 = vector.shape_cast %32 : vector<16xf32> to vector<16x1xf32>
    %34 = arith.addf %28, %33 : vector<16x1xf32>
    %35 = arith.subf %23, %19 : vector<16x1xf32>
    %36 = math.exp %35 : vector<16x1xf32>
    %37 = arith.subf %34, %36 : vector<16x1xf32>
    %38 = arith.mulf %3, %5 : vector<8x32xf32>
    %cst_13 = arith.constant dense<0.000000e+00> : vector<8xf32>
    %39 = vector.multi_reduction <add>, %38, %cst_13 [1] : vector<8x32xf32> to vector<8xf32>
    %40 = vector.shape_cast %39 : vector<8xf32> to vector<8x1xf32>
    %cst_14 = arith.constant 2.000000e+00 : f32
    %41 = vector.broadcast %cst_14 : f32 to vector<8x1xf32>
    %42 = arith.mulf %40, %41 : vector<8x1xf32>
    %43 = tpu.concatenate %42, %42 in 0 : vector<8x1xf32>, vector<8x1xf32> -> vector<16x1xf32>
    %44 = math.log %37 : vector<16x1xf32>
    %45 = arith.addf %19, %44 : vector<16x1xf32>
    %46 = arith.subf %45, %43 : vector<16x1xf32>
    %47 = vector.shape_cast %46 : vector<16x1xf32> to vector<1x16x1xf32>
    %cst_15 = arith.constant dense<0.000000e+00> : vector<1xf32>
    %48 = vector.multi_reduction <add>, %47, %cst_15 [1, 2] : vector<1x16x1xf32> to vector<1xf32>
    %49 = vector.shape_cast %48 : vector<1xf32> to vector<1x1x1xf32>
    %50 = vector.extract %49[0, 0, 0] : f32 from vector<1x1x1xf32>
    %51 = vector.broadcast %50 : f32 to vector<1x1x1xf32>
    %c0_16 = arith.constant 0 : index
    %c0_17 = arith.constant 0 : index
    %c0_18 = arith.constant 0 : index
    %52 = vector.load %arg3[%c0_16, %c0_17, %c0_18] : memref<1x1x1xf32, #tpu.memory_space<vmem>>, vector<1x1x1xf32>
    tpu.vector_store %arg3[%c0_16, %c0_17, %c0_18], %51 {strides = array<i32>} : memref<1x1x1xf32, #tpu.memory_space<vmem>>, vector<1x1x1xf32>,
    return
  }
  func.func @transform_0(%arg0: i32) -> (i32, i32) {
    %c0_i32 = arith.constant 0 : i32
    %c0_i32_0 = arith.constant 0 : i32
    %c0_i32_1 = arith.constant 0 : i32
    return %c0_i32, %c0_i32_0 : i32, i32
  }
  func.func @transform_1(%arg0: i32) -> (i32, i32) {
    %c0_i32 = arith.constant 0 : i32
    %c0_i32_0 = arith.constant 0 : i32
    %c0_i32_1 = arith.constant 0 : i32
    return %c0_i32, %c0_i32_0 : i32, i32
  }
  func.func @transform_2(%arg0: i32) -> (i32, i32, i32) {
    %c0_i32 = arith.constant 0 : i32
    %c0_i32_0 = arith.constant 0 : i32
    %c0_i32_1 = arith.constant 0 : i32
    return %arg0, %c0_i32, %c0_i32_0 : i32, i32, i32
  }
}

</mosaic_0001>

<llo_original>
// kernel: tpu_custom_call.1
$region0: #{tpu_custom_call.1}
  #allocation0 [shape = 'u32[]', space=smem, size = 0x4, offset = 0x4, fixed_abs, tag = 'smem constant byte address 0x4 - core index']
  #allocation1 [shape = 'u32[144,128]{1,0:T(1,128)}', space=vmem, size = 0x12000, scoped, tag = 'internal scratch']
  %s0 = inlined_call_operand.hbm [shape: f32[8,32], index: 0, kind: input, shape index: {}]
  %s1 = inlined_call_operand.hbm [shape: f32[8,32], index: 1, kind: input, shape index: {}]
  %s2 = inlined_call_operand.hbm [shape: f32[1,1,1], index: 2, kind: output, shape index: {}]
  %s3 = sld [smem:[#allocation0]]
  $region26: #{tpu_custom_call.1} parent=0
    _
  %s5 = ssub.s32 1, %s3
  %s6 = scalar_select 0, %s5, %s3
  $region1: #{tpu_custom_call.1} parent=0
    #allocation2 [shape = 'u8[4096]{0}', space=vmem, size = 0x1000, scoped, tag = 'input window, operand 0, single buffered']
    #allocation3 [shape = 's32[1]{0}', space=sflag, size = 0x4, scoped, tag = 'scoped memory for tpu_custom_call.1']
    #allocation4 [shape = 's32[1]{0}', space=sflag, size = 0x4, scoped, tag = 'scoped memory for tpu_custom_call.1']
    #allocation5 [shape = 'u8[4096]{0}', space=vmem, size = 0x1000, scoped, tag = 'input window, operand 1, single buffered']
    #allocation6 [shape = 's32[1]{0}', space=sflag, size = 0x4, scoped, tag = 'scoped memory for tpu_custom_call.1']
    #allocation7 [shape = 'u8[512]{0}', space=vmem, size = 0x400, scoped, tag = 'output window, operand 0, single buffered']
    %7 = vsyncpa [#allocation3], 0
    %8 = vsyncpa [#allocation6], 0
    %9 = vsyncpa [#allocation4], 0
    // Predicated region
    $region2: #{tpu_custom_call.1} parent=1 // pred_check
      _
    $region3: #{tpu_custom_call.1} parent=1 // pred_check_branch
      %11 = sbr.rel (0) target = $region5
    $region4: #{tpu_custom_call.1} parent=1 // pred_region
      %s13 = ssub.s32 128, 128
      %14 = vsyncadd [#allocation3], %s13
      %s16 = sshll.u32 [#allocation2], 4
      %s17 = int_to_ptr.vmem [resolvable:$true] %s16
      %19 = dma.hbm_to_vmem [thread:$0]  %s0, 128, %s17, [#allocation3]
    $region5: #{tpu_custom_call.1} parent=1 // pred_fallthru
      _
    // Predicated region
    $region6: #{tpu_custom_call.1} parent=1 // pred_check
      _
    $region7: #{tpu_custom_call.1} parent=1 // pred_check_branch
      %21 = sbr.rel (0) target = $region9
    $region8: #{tpu_custom_call.1} parent=1 // pred_region
      %s23 = ssub.s32 128, 128
      %24 = vsyncadd [#allocation6], %s23
      %s26 = sshll.u32 [#allocation5], 4
      %s27 = int_to_ptr.vmem [resolvable:$true] %s26
      %29 = dma.hbm_to_vmem [thread:$0]  %s1, 128, %s27, [#allocation6]
    $region9: #{tpu_custom_call.1} parent=1 // pred_fallthru
      _
    // Predicated region
    $region10: #{tpu_custom_call.1} parent=1 // pred_check
      _
    $region11: #{tpu_custom_call.1} parent=1 // pred_check_branch
      %31 = sbr.rel (0) target = $region13
    $region12: #{tpu_custom_call.1} parent=1 // pred_region
      %32 = dma.done [#allocation3], 128
    $region13: #{tpu_custom_call.1} parent=1 // pred_fallthru
      _
    // Predicated region
    $region14: #{tpu_custom_call.1} parent=1 // pred_check
      _
    $region15: #{tpu_custom_call.1} parent=1 // pred_check_branch
      %34 = sbr.rel (0) target = $region17
    $region16: #{tpu_custom_call.1} parent=1 // pred_region
      %35 = dma.done [#allocation6], 128
    $region17: #{tpu_custom_call.1} parent=1 // pred_fallthru
      _
    %s36 = smul.u32 0, 8
    %s37 = scalar_lea.vmem [#allocation2], %s36
    %v38 = vld [vmem:[%s37] sm:$0xff]
    %s39 = scalar_lea.vmem [#allocation5], %s36
    %v40 = vld [vmem:[%s39] sm:$0xff]
    %v41 = vmul.f32 %v38, 2.0
    %v42 = vmul.f32 %v40, 2.0
    %v43 = vld [vmem:[#allocation2] sm:$0xff]
    %vm44 = vcmask 261120
    %v46 = vsel %vm44, %v41, 0
    %v49 = vsel %vm44, %v42, 0
    %v52 = vsel %vm44, %v43, 0
    %54 = vmatprep.subr.mxu0 0.0
    %55 = vmatpush1.xpose.msra.mxu0 0.0
    %56 = vmatprep.subr.mxu0 0.0
    %57 = vmatpush1.xpose.msra.mxu0 0.0
    %58 = vmatprep.subr.mxu0 0.0
    %59 = vmatpush1.xpose.msra.mxu0 0.0
    %60 = vmatprep.subr.mxu0 0.0
    %61 = vmatpush1.xpose.msra.mxu0 0.0
    %62 = vmatprep.subr.mxu0 0.0
    %63 = vmatpush1.xpose.msra.mxu0 0.0
    %64 = vmatprep.subr.mxu0 0.0
    %65 = vmatpush1.xpose.msra.mxu0 0.0
    %66 = vmatprep.subr.mxu0 0.0
    %67 = vmatpush1.xpose.msra.mxu0 0.0
    %68 = vmatprep.subr.mxu0 0.0
    %69 = vmatpush1.xpose.msra.mxu0 0.0
    %70 = vmatprep.subr.mxu0 0.0
    %71 = vmatpush1.xpose.msra.mxu0 0.0
    %72 = vmatprep.subr.mxu0 0.0
    %73 = vmatpush1.xpose.msra.mxu0 0.0
    %74 = vmatprep.subr.mxu0 0.0
    %75 = vmatpush1.xpose.msra.mxu0 0.0
    %76 = vmatprep.subr.mxu0 0.0
    %77 = vmatpush1.xpose.msra.mxu0 0.0
    %78 = vmatprep.subr.mxu0 0.0
    %79 = vmatpush1.xpose.msra.mxu0 0.0
    %80 = vmatprep.subr.mxu0 0.0
    %81 = vmatpush1.xpose.msra.mxu0 0.0
    %82 = vmatprep.subr.mxu0 0.0
    %83 = vmatpush1.xpose.msra.mxu0 0.0
    %84 = vmatprep.subr.mxu0 0.0
    %85 = vmatpush1.xpose.msra.mxu0 %v52
    %86 = vmatprep.subr.mxu0 0.0
    %87 = vmatpush2.xpose.msra.mxu0 0.0
    %88 = vmatprep.subr.mxu0 0.0
    %89 = vmatpush2.xpose.msra.mxu0 0.0
    %90 = vmatprep.subr.mxu0 0.0
    %91 = vmatpush2.xpose.msra.mxu0 0.0
    %92 = vmatprep.subr.mxu0 0.0
    %93 = vmatpush2.xpose.msra.mxu0 0.0
    %94 = vmatprep.subr.mxu0 0.0
    %95 = vmatpush2.xpose.msra.mxu0 0.0
    %96 = vmatprep.subr.mxu0 0.0
    %97 = vmatpush2.xpose.msra.mxu0 0.0
    %98 = vmatprep.subr.mxu0 0.0
    %99 = vmatpush2.xpose.msra.mxu0 0.0
    %100 = vmatprep.subr.mxu0 0.0
    %101 = vmatpush2.xpose.msra.mxu0 0.0
    %102 = vmatprep.subr.mxu0 0.0
    %103 = vmatpush2.xpose.msra.mxu0 0.0
    %104 = vmatprep.subr.mxu0 0.0
    %105 = vmatpush2.xpose.msra.mxu0 0.0
    %106 = vmatprep.subr.mxu0 0.0
    %107 = vmatpush2.xpose.msra.mxu0 0.0
    %108 = vmatprep.subr.mxu0 0.0
    %109 = vmatpush2.xpose.msra.mxu0 0.0
    %110 = vmatprep.subr.mxu0 0.0
    %111 = vmatpush2.xpose.msra.mxu0 0.0
    %112 = vmatprep.subr.mxu0 0.0
    %113 = vmatpush2.xpose.msra.mxu0 0.0
    %114 = vmatprep.subr.mxu0 0.0
    %115 = vmatpush2.xpose.msra.mxu0 0.0
    %116 = vmatprep.subr.mxu0 0.0
    %117 = vmatpush2.xpose.msra.mxu0 0.0
    %118 = vmatprep.mubr.f32.mxu0 0.0
    %119 = vmatmul.mubr.f32.gmra.mxu0 %v46
    %v120 = vpop.f32.mrf.mxu0
    %v121 = vadd.f32 0.0, %v120
    %v122 = vpop.f32.mrf.mxu0
    %123 = vmatprep.mubr.f32.mxu0 0.0
    %124 = vmatmul.mubr.f32.gmra.mxu0 %v49
    %v125 = vpop.f32.mrf.mxu0
    %v126 = vadd.f32 0.0, %v125
    %v127 = vpop.f32.mrf.mxu0
    %128 = vdwg.mxu0
    %v129 = vld [vmem:[#allocation5] sm:$0xff]
    %v131 = vsel %vm44, %v129, 0
    %133 = vmatprep.subr.mxu0 0.0
    %134 = vmatpush1.xpose.msra.mxu0 0.0
    %135 = vmatprep.subr.mxu0 0.0
    %136 = vmatpush1.xpose.msra.mxu0 0.0
    %137 = vmatprep.subr.mxu0 0.0
    %138 = vmatpush1.xpose.msra.mxu0 0.0
    %139 = vmatprep.subr.mxu0 0.0
    %140 = vmatpush1.xpose.msra.mxu0 0.0
    %141 = vmatprep.subr.mxu0 0.0
    %142 = vmatpush1.xpose.msra.mxu0 0.0
    %143 = vmatprep.subr.mxu0 0.0
    %144 = vmatpush1.xpose.msra.mxu0 0.0
    %145 = vmatprep.subr.mxu0 0.0
    %146 = vmatpush1.xpose.msra.mxu0 0.0
    %147 = vmatprep.subr.mxu0 0.0
    %148 = vmatpush1.xpose.msra.mxu0 0.0
    %149 = vmatprep.subr.mxu0 0.0
    %150 = vmatpush1.xpose.msra.mxu0 0.0
    %151 = vmatprep.subr.mxu0 0.0
    %152 = vmatpush1.xpose.msra.mxu0 0.0
    %153 = vmatprep.subr.mxu0 0.0
    %154 = vmatpush1.xpose.msra.mxu0 0.0
    %155 = vmatprep.subr.mxu0 0.0
    %156 = vmatpush1.xpose.msra.mxu0 0.0
    %157 = vmatprep.subr.mxu0 0.0
    %158 = vmatpush1.xpose.msra.mxu0 0.0
    %159 = vmatprep.subr.mxu0 0.0
    %160 = vmatpush1.xpose.msra.mxu0 0.0
    %161 = vmatprep.subr.mxu0 0.0
    %162 = vmatpush1.xpose.msra.mxu0 0.0
    %163 = vmatprep.subr.mxu0 0.0
    %164 = vmatpush1.xpose.msra.mxu0 %v131
    %165 = vmatprep.subr.mxu0 0.0
    %166 = vmatpush2.xpose.msra.mxu0 0.0
    %167 = vmatprep.subr.mxu0 0.0
    %168 = vmatpush2.xpose.msra.mxu0 0.0
    %169 = vmatprep.subr.mxu0 0.0
    %170 = vmatpush2.xpose.msra.mxu0 0.0
    %171 = vmatprep.subr.mxu0 0.0
    %172 = vmatpush2.xpose.msra.mxu0 0.0
    %173 = vmatprep.subr.mxu0 0.0
    %174 = vmatpush2.xpose.msra.mxu0 0.0
    %175 = vmatprep.subr.mxu0 0.0
    %176 = vmatpush2.xpose.msra.mxu0 0.0
    %177 = vmatprep.subr.mxu0 0.0
    %178 = vmatpush2.xpose.msra.mxu0 0.0
    %179 = vmatprep.subr.mxu0 0.0
    %180 = vmatpush2.xpose.msra.mxu0 0.0
    %181 = vmatprep.subr.mxu0 0.0
    %182 = vmatpush2.xpose.msra.mxu0 0.0
    %183 = vmatprep.subr.mxu0 0.0
    %184 = vmatpush2.xpose.msra.mxu0 0.0
    %185 = vmatprep.subr.mxu0 0.0
    %186 = vmatpush2.xpose.msra.mxu0 0.0
    %187 = vmatprep.subr.mxu0 0.0
    %188 = vmatpush2.xpose.msra.mxu0 0.0
    %189 = vmatprep.subr.mxu0 0.0
    %190 = vmatpush2.xpose.msra.mxu0 0.0
    %191 = vmatprep.subr.mxu0 0.0
    %192 = vmatpush2.xpose.msra.mxu0 0.0
    %193 = vmatprep.subr.mxu0 0.0
    %194 = vmatpush2.xpose.msra.mxu0 0.0
    %195 = vmatprep.subr.mxu0 0.0
    %196 = vmatpush2.xpose.msra.mxu0 0.0
    %197 = vmatprep.mubr.f32.mxu0 0.0
    %198 = vmatmul.mubr.f32.gmra.mxu0 %v46
    %v199 = vpop.f32.mrf.mxu0
    %v200 = vadd.f32 0.0, %v199
    %v201 = vpop.f32.mrf.mxu0
    %202 = vmatprep.mubr.f32.mxu0 0.0
    %203 = vmatmul.mubr.f32.gmra.mxu0 %v49
    %v204 = vpop.f32.mrf.mxu0
    %v205 = vadd.f32 0.0, %v204
    %v206 = vpop.f32.mrf.mxu0
    %207 = vdwg.mxu0
    %vm208 = vcmask 64512
    %v209 = vsel %vm208, %v121, -inf
    %210 = vmax.xlane.f32.xlu0 %v209
    %v211 = vpop.xlane.xlu0 %210
    %v212 = vsel %vm208, %v126, -inf
    %213 = vmax.xlane.f32.xlu0 %v212
    %v214 = vpop.xlane.xlu0 %213
    %v215 = vsel %vm208, %v200, -inf
    %216 = vmax.xlane.f32.xlu0 %v215
    %v217 = vpop.xlane.xlu0 %216
    %v218 = vsel %vm208, %v205, -inf
    %219 = vmax.xlane.f32.xlu0 %v218
    %v220 = vpop.xlane.xlu0 %219
    %v221 = vmax.f32 %v211, %v217
    %v222 = vmax.f32 %v214, %v220
    %v223 = vmul.f32 %v41, %v38
    %v224 = vmul.f32 %v42, %v40
    %v225 = vsel %vm44, %v223, 0.0
    %226 = vadd.xlane.f32.xlu0 %v225
    %v227 = vpop.xlane.xlu0 %226
    %v228 = vsel %vm44, %v224, 0.0
    %229 = vadd.xlane.f32.xlu0 %v228
    %v230 = vpop.xlane.xlu0 %229
    %v231 = vsub.f32 %v121, %v221
    %v232 = vsub.f32 %v126, %v222
    %v233 = vmul.f32 %v231, 1.442695
    %v234 = vpow.pop %v233
    %v235 = vmul.f32 %v232, 1.442695
    %v236 = vpow.pop %v235
    %v237 = vsel %vm208, %v234, 0.0
    %238 = vadd.xlane.f32.xlu0 %v237
    %v239 = vpop.xlane.xlu0 %238
    %v240 = vsel %vm208, %v236, 0.0
    %241 = vadd.xlane.f32.xlu0 %v240
    %v242 = vpop.xlane.xlu0 %241
    %v243 = vsub.f32 %v200, %v221
    %v244 = vsub.f32 %v205, %v222
    %v245 = vmul.f32 %v243, 1.442695
    %v246 = vpow.pop %v245
    %v247 = vmul.f32 %v244, 1.442695
    %v248 = vpow.pop %v247
    %v249 = vsel %vm208, %v246, 0.0
    %250 = vadd.xlane.f32.xlu0 %v249
    %v251 = vpop.xlane.xlu0 %250
    %v252 = vsel %vm208, %v248, 0.0
    %253 = vadd.xlane.f32.xlu0 %v252
    %v254 = vpop.xlane.xlu0 %253
    %v255 = vadd.f32 %v239, %v251
    %v256 = vadd.f32 %v242, %v254
    %v257 = vsub.f32 %v227, %v221
    %v258 = vsub.f32 %v230, %v222
    %v259 = vmul.f32 %v257, 1.442695
    %v260 = vpow.pop %v259
    %v261 = vmul.f32 %v258, 1.442695
    %v262 = vpow.pop %v261
    %v263 = vsub.f32 %v255, %v260
    %v264 = vsub.f32 %v256, %v262
    %v265 = vmul.f32 %v38, %v40
    %v266 = vsel %vm44, %v265, 0.0
    %267 = vadd.xlane.f32.xlu0 %v266
    %v268 = vpop.xlane.xlu0 %267
    %v269 = vmul.f32 %v268, 2.0
    %v270 = vlog2.pop %v263
    %v271 = vmul.f32 %v270, 0.6931472
    %v272 = vlog2.pop %v264
    %v273 = vmul.f32 %v272, 0.6931472
    %v274 = vadd.f32 %v221, %v271
    %v275 = vadd.f32 %v222, %v273
    %v276 = vsub.f32 %v274, %v269
    %v277 = vsub.f32 %v275, %v269
    %vm278 = vcmask 7168
    %v279 = vsel %vm278, %v276, 0.0
    %v280 = vsel %vm278, %v277, 0.0
    %v281 = vadd.f32 %v279, %v280
    %282 = vadd.xlane.f32.xlu0 %v281
    %v283 = vpop.xlane.xlu0 %282
    %v284 = vrot.slane %v283, 4
    %v285 = vadd.f32 %v283, %v284
    %v286 = vrot.slane %v285, 2
    %v287 = vadd.f32 %v285, %v286
    %v288 = vrot.slane %v287, 1
    %v289 = vadd.f32 %v287, %v288
    %s290 = vtos %v289
    %v291 = vstv %s290
    %vm292 = vcmask 0
    %293 = vst.msk [vmem:[#allocation7] sm:$0x1] %vm292, %v291
    // Predicated region
    $region18: #{tpu_custom_call.1} parent=1 // pred_check
      _
    $region19: #{tpu_custom_call.1} parent=1 // pred_check_branch
      %295 = sbr.rel (0) target = $region21
    $region20: #{tpu_custom_call.1} parent=1 // pred_region
      %s297 = ssub.s32 16, 16
      %298 = vsyncadd [#allocation4], %s297
      %s300 = sshll.u32 [#allocation7], 4
      %s301 = int_to_ptr.vmem [resolvable:$true] %s300
      %303 = dma.vmem_to_hbm [thread:$0]  %s301, 16, %s2, [#allocation4]
    $region21: #{tpu_custom_call.1} parent=1 // pred_fallthru
      _
    // Predicated region
    $region22: #{tpu_custom_call.1} parent=1 // pred_check
      _
    $region23: #{tpu_custom_call.1} parent=1 // pred_check_branch
      %305 = sbr.rel (0) target = $region25
    $region24: #{tpu_custom_call.1} parent=1 // pred_region
      %306 = dma.done [#allocation4], 16
    $region25: #{tpu_custom_call.1} parent=1 // pred_fallthru
      _
    %307 = vsyncpa [#allocation3], 1
    %308 = vsyncpa [#allocation6], 1
    %309 = vsyncpa [#allocation4], 1

// kernel: tpu_custom_call.1
$region0: #{tpu_custom_call.1}
  #allocation0 [shape = 'u32[]', space=smem, size = 0x4, offset = 0x4, fixed_abs, tag = 'smem constant byte address 0x4 - core index']
  #allocation1 [shape = 'u32[144,128]{1,0:T(1,128)}', space=vmem, size = 0x12000, scoped, tag = 'internal scratch']
  %s0 = inlined_call_operand.hbm [shape: f32[8,32], index: 0, kind: input, shape index: {}]
  %s1 = inlined_call_operand.hbm [shape: f32[8,32], index: 1, kind: input, shape index: {}]
  %s2 = inlined_call_operand.hbm [shape: f32[1,1,1], index: 2, kind: output, shape index: {}]
  %s3 = sld [smem:[#allocation0]]
  $region26: #{tpu_custom_call.1} parent=0
    _
  %s5 = ssub.s32 1, %s3
  %s6 = scalar_select 0, %s5, %s3
  $region1: #{tpu_custom_call.1} parent=0
    #allocation2 [shape = 'u8[4096]{0}', space=vmem, size = 0x1000, scoped, tag = 'input window, operand 0, single buffered']
    #allocation3 [shape = 's32[1]{0}', space=sflag, size = 0x4, scoped, tag = 'scoped memory for tpu_custom_call.1']
    #allocation4 [shape = 's32[1]{0}', space=sflag, size = 0x4, scoped, tag = 'scoped memory for tpu_custom_call.1']
    #allocation5 [shape = 'u8[4096]{0}', space=vmem, size = 0x1000, scoped, tag = 'input window, operand 1, single buffered']
    #allocation6 [shape = 's32[1]{0}', space=sflag, size = 0x4, scoped, tag = 'scoped memory for tpu_custom_call.1']
    #allocation7 [shape = 'u8[512]{0}', space=vmem, size = 0x400, scoped, tag = 'output window, operand 0, single buffered']
    %7 = vsyncpa [#allocation3], 0
    %8 = vsyncpa [#allocation6], 0
    %9 = vsyncpa [#allocation4], 0
    // Predicated region
    $region2: #{tpu_custom_call.1} parent=1 // pred_check
      _
    $region3: #{tpu_custom_call.1} parent=1 // pred_check_branch
      %11 = sbr.rel (0) target = $region5
    $region4: #{tpu_custom_call.1} parent=1 // pred_region
      %s13 = ssub.s32 128, 128
      %14 = vsyncadd [#allocation3], %s13
      %s16 = sshll.u32 [#allocation2], 4
      %s17 = int_to_ptr.vmem [resolvable:$true] %s16
      %19 = dma.hbm_to_vmem [thread:$0]  %s0, 128, %s17, [#allocation3]
    $region5: #{tpu_custom_call.1} parent=1 // pred_fallthru
      _
    // Predicated region
    $region6: #{tpu_custom_call.1} parent=1 // pred_check
      _
    $region7: #{tpu_custom_call.1} parent=1 // pred_check_branch
      %21 = sbr.rel (0) target = $region9
    $region8: #{tpu_custom_call.1} parent=1 // pred_region
      %s23 = ssub.s32 128, 128
      %24 = vsyncadd [#allocation6], %s23
      %s26 = sshll.u32 [#allocation5], 4
      %s27 = int_to_ptr.vmem [resolvable:$true] %s26
      %29 = dma.hbm_to_vmem [thread:$0]  %s1, 128, %s27, [#allocation6]
    $region9: #{tpu_custom_call.1} parent=1 // pred_fallthru
      _
    // Predicated region
    $region10: #{tpu_custom_call.1} parent=1 // pred_check
      _
    $region11: #{tpu_custom_call.1} parent=1 // pred_check_branch
      %31 = sbr.rel (0) target = $region13
    $region12: #{tpu_custom_call.1} parent=1 // pred_region
      %32 = dma.done [#allocation3], 128
    $region13: #{tpu_custom_call.1} parent=1 // pred_fallthru
      _
    // Predicated region
    $region14: #{tpu_custom_call.1} parent=1 // pred_check
      _
    $region15: #{tpu_custom_call.1} parent=1 // pred_check_branch
      %34 = sbr.rel (0) target = $region17
    $region16: #{tpu_custom_call.1} parent=1 // pred_region
      %35 = dma.done [#allocation6], 128
    $region17: #{tpu_custom_call.1} parent=1 // pred_fallthru
      _
    %s36 = smul.u32 0, 8
    %s37 = scalar_lea.vmem [#allocation2], %s36
    %v38 = vld [vmem:[%s37] sm:$0xff]
    %s39 = scalar_lea.vmem [#allocation5], %s36
    %v40 = vld [vmem:[%s39] sm:$0xff]
    %v41 = vmul.f32 %v38, 2.0
    %v42 = vmul.f32 %v40, 2.0
    %v43 = vld [vmem:[#allocation2] sm:$0xff]
    %vm44 = vcmask 261120
    %v46 = vsel %vm44, %v41, 0
    %v49 = vsel %vm44, %v42, 0
    %v52 = vsel %vm44, %v43, 0
    %54 = vmatprep.subr.mxu0 0.0
    %55 = vmatpush1.xpose.msra.mxu0 0.0
    %56 = vmatprep.subr.mxu0 0.0
    %57 = vmatpush1.xpose.msra.mxu0 0.0
    %58 = vmatprep.subr.mxu0 0.0
    %59 = vmatpush1.xpose.msra.mxu0 0.0
    %60 = vmatprep.subr.mxu0 0.0
    %61 = vmatpush1.xpose.msra.mxu0 0.0
    %62 = vmatprep.subr.mxu0 0.0
    %63 = vmatpush1.xpose.msra.mxu0 0.0
    %64 = vmatprep.subr.mxu0 0.0
    %65 = vmatpush1.xpose.msra.mxu0 0.0
    %66 = vmatprep.subr.mxu0 0.0
    %67 = vmatpush1.xpose.msra.mxu0 0.0
    %68 = vmatprep.subr.mxu0 0.0
    %69 = vmatpush1.xpose.msra.mxu0 0.0
    %70 = vmatprep.subr.mxu0 0.0
    %71 = vmatpush1.xpose.msra.mxu0 0.0
    %72 = vmatprep.subr.mxu0 0.0
    %73 = vmatpush1.xpose.msra.mxu0 0.0
    %74 = vmatprep.subr.mxu0 0.0
    %75 = vmatpush1.xpose.msra.mxu0 0.0
    %76 = vmatprep.subr.mxu0 0.0
    %77 = vmatpush1.xpose.msra.mxu0 0.0
    %78 = vmatprep.subr.mxu0 0.0
    %79 = vmatpush1.xpose.msra.mxu0 0.0
    %80 = vmatprep.subr.mxu0 0.0
    %81 = vmatpush1.xpose.msra.mxu0 0.0
    %82 = vmatprep.subr.mxu0 0.0
    %83 = vmatpush1.xpose.msra.mxu0 0.0
    %84 = vmatprep.subr.mxu0 0.0
    %85 = vmatpush1.xpose.msra.mxu0 %v52
    %86 = vmatprep.subr.mxu0 0.0
    %87 = vmatpush2.xpose.msra.mxu0 0.0
    %88 = vmatprep.subr.mxu0 0.0
    %89 = vmatpush2.xpose.msra.mxu0 0.0
    %90 = vmatprep.subr.mxu0 0.0
    %91 = vmatpush2.xpose.msra.mxu0 0.0
    %92 = vmatprep.subr.mxu0 0.0
    %93 = vmatpush2.xpose.msra.mxu0 0.0
    %94 = vmatprep.subr.mxu0 0.0
    %95 = vmatpush2.xpose.msra.mxu0 0.0
    %96 = vmatprep.subr.mxu0 0.0
    %97 = vmatpush2.xpose.msra.mxu0 0.0
    %98 = vmatprep.subr.mxu0 0.0
    %99 = vmatpush2.xpose.msra.mxu0 0.0
    %100 = vmatprep.subr.mxu0 0.0
    %101 = vmatpush2.xpose.msra.mxu0 0.0
    %102 = vmatprep.subr.mxu0 0.0
    %103 = vmatpush2.xpose.msra.mxu0 0.0
    %104 = vmatprep.subr.mxu0 0.0
    %105 = vmatpush2.xpose.msra.mxu0 0.0
    %106 = vmatprep.subr.mxu0 0.0
    %107 = vmatpush2.xpose.msra.mxu0 0.0
    %108 = vmatprep.subr.mxu0 0.0
    %109 = vmatpush2.xpose.msra.mxu0 0.0
    %110 = vmatprep.subr.mxu0 0.0
    %111 = vmatpush2.xpose.msra.mxu0 0.0
    %112 = vmatprep.subr.mxu0 0.0
    %113 = vmatpush2.xpose.msra.mxu0 0.0
    %114 = vmatprep.subr.mxu0 0.0
    %115 = vmatpush2.xpose.msra.mxu0 0.0
    %116 = vmatprep.subr.mxu0 0.0
    %117 = vmatpush2.xpose.msra.mxu0 0.0
    %118 = vmatprep.mubr.f32.mxu0 0.0
    %119 = vmatmul.mubr.f32.gmra.mxu0 %v46
    %v120 = vpop.f32.mrf.mxu0
    %v121 = vadd.f32 0.0, %v120
    %v122 = vpop.f32.mrf.mxu0
    %123 = vmatprep.mubr.f32.mxu0 0.0
    %124 = vmatmul.mubr.f32.gmra.mxu0 %v49
    %v125 = vpop.f32.mrf.mxu0
    %v126 = vadd.f32 0.0, %v125
    %v127 = vpop.f32.mrf.mxu0
    %128 = vdwg.mxu0
    %v129 = vld [vmem:[#allocation5] sm:$0xff]
    %v131 = vsel %vm44, %v129, 0
    %133 = vmatprep.subr.mxu0 0.0
    %134 = vmatpush1.xpose.msra.mxu0 0.0
    %135 = vmatprep.subr.mxu0 0.0
    %136 = vmatpush1.xpose.msra.mxu0 0.0
    %137 = vmatprep.subr.mxu0 0.0
    %138 = vmatpush1.xpose.msra.mxu0 0.0
    %139 = vmatprep.subr.mxu0 0.0
    %140 = vmatpush1.xpose.msra.mxu0 0.0
    %141 = vmatprep.subr.mxu0 0.0
    %142 = vmatpush1.xpose.msra.mxu0 0.0
    %143 = vmatprep.subr.mxu0 0.0
    %144 = vmatpush1.xpose.msra.mxu0 0.0
    %145 = vmatprep.subr.mxu0 0.0
    %146 = vmatpush1.xpose.msra.mxu0 0.0
    %147 = vmatprep.subr.mxu0 0.0
    %148 = vmatpush1.xpose.msra.mxu0 0.0
    %149 = vmatprep.subr.mxu0 0.0
    %150 = vmatpush1.xpose.msra.mxu0 0.0
    %151 = vmatprep.subr.mxu0 0.0
    %152 = vmatpush1.xpose.msra.mxu0 0.0
    %153 = vmatprep.subr.mxu0 0.0
    %154 = vmatpush1.xpose.msra.mxu0 0.0
    %155 = vmatprep.subr.mxu0 0.0
    %156 = vmatpush1.xpose.msra.mxu0 0.0
    %157 = vmatprep.subr.mxu0 0.0
    %158 = vmatpush1.xpose.msra.mxu0 0.0
    %159 = vmatprep.subr.mxu0 0.0
    %160 = vmatpush1.xpose.msra.mxu0 0.0
    %161 = vmatprep.subr.mxu0 0.0
    %162 = vmatpush1.xpose.msra.mxu0 0.0
    %163 = vmatprep.subr.mxu0 0.0
    %164 = vmatpush1.xpose.msra.mxu0 %v131
    %165 = vmatprep.subr.mxu0 0.0
    %166 = vmatpush2.xpose.msra.mxu0 0.0
    %167 = vmatprep.subr.mxu0 0.0
    %168 = vmatpush2.xpose.msra.mxu0 0.0
    %169 = vmatprep.subr.mxu0 0.0
    %170 = vmatpush2.xpose.msra.mxu0 0.0
    %171 = vmatprep.subr.mxu0 0.0
    %172 = vmatpush2.xpose.msra.mxu0 0.0
    %173 = vmatprep.subr.mxu0 0.0
    %174 = vmatpush2.xpose.msra.mxu0 0.0
    %175 = vmatprep.subr.mxu0 0.0
    %176 = vmatpush2.xpose.msra.mxu0 0.0
    %177 = vmatprep.subr.mxu0 0.0
    %178 = vmatpush2.xpose.msra.mxu0 0.0
    %179 = vmatprep.subr.mxu0 0.0
    %180 = vmatpush2.xpose.msra.mxu0 0.0
    %181 = vmatprep.subr.mxu0 0.0
    %182 = vmatpush2.xpose.msra.mxu0 0.0
    %183 = vmatprep.subr.mxu0 0.0
    %184 = vmatpush2.xpose.msra.mxu0 0.0
    %185 = vmatprep.subr.mxu0 0.0
    %186 = vmatpush2.xpose.msra.mxu0 0.0
    %187 = vmatprep.subr.mxu0 0.0
    %188 = vmatpush2.xpose.msra.mxu0 0.0
    %189 = vmatprep.subr.mxu0 0.0
    %190 = vmatpush2.xpose.msra.mxu0 0.0
    %191 = vmatprep.subr.mxu0 0.0
    %192 = vmatpush2.xpose.msra.mxu0 0.0
    %193 = vmatprep.subr.mxu0 0.0
    %194 = vmatpush2.xpose.msra.mxu0 0.0
    %195 = vmatprep.subr.mxu0 0.0
    %196 = vmatpush2.xpose.msra.mxu0 0.0
    %197 = vmatprep.mubr.f32.mxu0 0.0
    %198 = vmatmul.mubr.f32.gmra.mxu0 %v46
    %v199 = vpop.f32.mrf.mxu0
    %v200 = vadd.f32 0.0, %v199
    %v201 = vpop.f32.mrf.mxu0
    %202 = vmatprep.mubr.f32.mxu0 0.0
    %203 = vmatmul.mubr.f32.gmra.mxu0 %v49
    %v204 = vpop.f32.mrf.mxu0
    %v205 = vadd.f32 0.0, %v204
    %v206 = vpop.f32.mrf.mxu0
    %207 = vdwg.mxu0
    %vm208 = vcmask 64512
    %v209 = vsel %vm208, %v121, -inf
    %210 = vmax.xlane.f32.xlu0 %v209
    %v211 = vpop.xlane.xlu0 %210
    %v212 = vsel %vm208, %v126, -inf
    %213 = vmax.xlane.f32.xlu0 %v212
    %v214 = vpop.xlane.xlu0 %213
    %v215 = vsel %vm208, %v200, -inf
    %216 = vmax.xlane.f32.xlu0 %v215
    %v217 = vpop.xlane.xlu0 %216
    %v218 = vsel %vm208, %v205, -inf
    %219 = vmax.xlane.f32.xlu0 %v218
    %v220 = vpop.xlane.xlu0 %219
    %v221 = vmax.f32 %v211, %v217
    %v222 = vmax.f32 %v214, %v220
    %v223 = vmul.f32 %v41, %v38
    %v224 = vmul.f32 %v42, %v40
    %v225 = vsel %vm44, %v223, 0.0
    %226 = vadd.xlane.f32.xlu0 %v225
    %v227 = vpop.xlane.xlu0 %226
    %v228 = vsel %vm44, %v224, 0.0
    %229 = vadd.xlane.f32.xlu0 %v228
    %v230 = vpop.xlane.xlu0 %229
    %v231 = vsub.f32 %v121, %v221
    %v232 = vsub.f32 %v126, %v222
    %v233 = vmul.f32 %v231, 1.442695
    %v234 = vpow.pop %v233
    %v235 = vmul.f32 %v232, 1.442695
    %v236 = vpow.pop %v235
    %v237 = vsel %vm208, %v234, 0.0
    %238 = vadd.xlane.f32.xlu0 %v237
    %v239 = vpop.xlane.xlu0 %238
    %v240 = vsel %vm208, %v236, 0.0
    %241 = vadd.xlane.f32.xlu0 %v240
    %v242 = vpop.xlane.xlu0 %241
    %v243 = vsub.f32 %v200, %v221
    %v244 = vsub.f32 %v205, %v222
    %v245 = vmul.f32 %v243, 1.442695
    %v246 = vpow.pop %v245
    %v247 = vmul.f32 %v244, 1.442695
    %v248 = vpow.pop %v247
    %v249 = vsel %vm208, %v246, 0.0
    %250 = vadd.xlane.f32.xlu0 %v249
    %v251 = vpop.xlane.xlu0 %250
    %v252 = vsel %vm208, %v248, 0.0
    %253 = vadd.xlane.f32.xlu0 %v252
    %v254 = vpop.xlane.xlu0 %253
    %v255 = vadd.f32 %v239, %v251
    %v256 = vadd.f32 %v242, %v254
    %v257 = vsub.f32 %v227, %v221
    %v258 = vsub.f32 %v230, %v222
    %v259 = vmul.f32 %v257, 1.442695
    %v260 = vpow.pop %v259
    %v261 = vmul.f32 %v258, 1.442695
    %v262 = vpow.pop %v261
    %v263 = vsub.f32 %v255, %v260
    %v264 = vsub.f32 %v256, %v262
    %v265 = vmul.f32 %v38, %v40
    %v266 = vsel %vm44, %v265, 0.0
    %267 = vadd.xlane.f32.xlu0 %v266
    %v268 = vpop.xlane.xlu0 %267
    %v269 = vmul.f32 %v268, 2.0
    %v270 = vlog2.pop %v263
    %v271 = vmul.f32 %v270, 0.6931472
    %v272 = vlog2.pop %v264
    %v273 = vmul.f32 %v272, 0.6931472
    %v274 = vadd.f32 %v221, %v271
    %v275 = vadd.f32 %v222, %v273
    %v276 = vsub.f32 %v274, %v269
    %v277 = vsub.f32 %v275, %v269
    %vm278 = vcmask 7168
    %v279 = vsel %vm278, %v276, 0.0
    %v280 = vsel %vm278, %v277, 0.0
    %v281 = vadd.f32 %v279, %v280
    %282 = vadd.xlane.f32.xlu0 %v281
    %v283 = vpop.xlane.xlu0 %282
    %v284 = vrot.slane %v283, 4
    %v285 = vadd.f32 %v283, %v284
    %v286 = vrot.slane %v285, 2
    %v287 = vadd.f32 %v285, %v286
    %v288 = vrot.slane %v287, 1
    %v289 = vadd.f32 %v287, %v288
    %s290 = vtos %v289
    %v291 = vstv %s290
    %vm292 = vcmask 0
    %293 = vst.msk [vmem:[#allocation7] sm:$0x1] %vm292, %v291
    // Predicated region
    $region18: #{tpu_custom_call.1} parent=1 // pred_check
      _
    $region19: #{tpu_custom_call.1} parent=1 // pred_check_branch
      %295 = sbr.rel (0) target = $region21
    $region20: #{tpu_custom_call.1} parent=1 // pred_region
      %s297 = ssub.s32 16, 16
      %298 = vsyncadd [#allocation4], %s297
      %s300 = sshll.u32 [#allocation7], 4
      %s301 = int_to_ptr.vmem [resolvable:$true] %s300
      %303 = dma.vmem_to_hbm [thread:$0]  %s301, 16, %s2, [#allocation4]
    $region21: #{tpu_custom_call.1} parent=1 // pred_fallthru
      _
    // Predicated region
    $region22: #{tpu_custom_call.1} parent=1 // pred_check
      _
    $region23: #{tpu_custom_call.1} parent=1 // pred_check_branch
      %305 = sbr.rel (0) target = $region25
    $region24: #{tpu_custom_call.1} parent=1 // pred_region
      %306 = dma.done [#allocation4], 16
    $region25: #{tpu_custom_call.1} parent=1 // pred_fallthru
      _
    %307 = vsyncpa [#allocation3], 1
    %308 = vsyncpa [#allocation6], 1
    %309 = vsyncpa [#allocation4], 1

</llo_original>
